<compile_context>
chip_gen: v7x
topology: tpu7x:2x2x1
jax: 0.10.0
libtpu: 0.0.40
codegen_flags: <defaults>
</compile_context>

<pallas_src>
import functools

import jax
import jax.numpy as jnp
from jax import lax
from jax.experimental import pallas as pl
from jax.experimental.pallas import tpu as pltpu


def _ceil8(v):
    return ((v + 7) // 8) * 8


# ---------------------------------------------------------------------------
# Fused whole-network kernel
# ---------------------------------------------------------------------------
def _make_network_kernel(treedef, n_params, H, W, bsz, outplane, roll_sign):
    HW = H * W
    L = bsz * HW   # lane extent (spatial x per-step batch)

    def kernel(*refs):
        x_ref = refs[0]                             # (1, cin_pad, L) bf16
        param_refs = refs[1:1 + n_params]
        o_ref = refs[1 + n_params]                  # (1, outplane, L) f32

        P = jax.tree_util.tree_unflatten(treedef, param_refs)

        # Spatial coordinates of every lane position (computed once).
        pos = lax.broadcasted_iota(jnp.int32, (1, L), 1)
        q = pos % HW                                # position within an image
        h_idx = q // W
        w_idx = q % W
        mask_cache = {}                             # (dh, dw) -> bf16 0/1 mask

        def tap_mask(dh, dw):
            if dh == 0 and dw == 0:
                return None
            key = (dh, dw)
            if key not in mask_cache:
                def conj(a, b):
                    return b if a is None else a & b
                valid = None
                if dh > 0:
                    valid = conj(valid, h_idx < H - dh)
                elif dh < 0:
                    valid = conj(valid, h_idx >= -dh)
                if dw > 0:
                    valid = conj(valid, w_idx < W - dw)
                elif dw < 0:
                    valid = conj(valid, w_idx >= -dw)
                mask_cache[key] = valid.astype(jnp.float32).astype(jnp.bfloat16)
            return mask_cache[key]

        def conv(y, w_ref, b_ref, K, dil, relu, residual=None):
            """y: (Cin, L).  Single im2col MXU matmul with folded-BN bias,
            optional residual add and ReLU (epilogue in f32)."""
            y_bf = y if y.dtype == jnp.bfloat16 else y.astype(jnp.bfloat16)
            c = K // 2
            taps = []
            for kh in range(K):
                dh = dil * (kh - c)
                for kw in range(K):
                    dw = dil * (kw - c)
                    s = dh * W + dw                 # lane shift for this tap
                    if s == 0:
                        t = y_bf
                    else:
                        # tap[p] = y[p + s]; boundary / wrap-around lanes are
                        # zeroed by the mask (also handles image boundaries
                        # when bsz > 1 images share the lane axis).
                        t = pltpu.roll(y_bf, (roll_sign * s) % L, axis=1)
                    m = tap_mask(dh, dw)
                    if m is not None:
                        t = t * m
                    taps.append(t)
            # Sublane-aligned concat (channel counts are multiples of 8).
            patch = jnp.concatenate(taps, axis=0) if len(taps) > 1 else taps[0]
            acc = jnp.dot(w_ref[...], patch, preferred_element_type=jnp.float32)
            acc = acc + b_ref[...]                  # folded BN bias (+ conv b)
            if residual is not None:
                acc = acc + residual
            if relu:
                acc = jnp.maximum(acc, 0.0)
            return acc

        def block(y, bp, dil):
            """BasicBlock: relu(bn2(conv2(relu(bn1(conv1(x))))) + shortcut)."""
            h = conv(y, bp["w1"], bp["b1"], 3, dil, relu=True)
            if "wsc" in bp:
                # 1x1 shortcut conv (bare conv, no BN — matches the module).
                res = jnp.dot(bp["wsc"][...], y.astype(jnp.bfloat16),
                              preferred_element_type=jnp.float32)
            else:
                res = y
            return conv(h, bp["w2"], bp["b2"], 3, dil, relu=True, residual=res)

        x2d = x_ref[0]                              # (cin_pad, L) bf16

        feat = conv(x2d, P["stem"]["w"], P["stem"]["b"], 5, 1, relu=True)
        f1 = block(feat, P["b1"], 1)
        f2 = block(f1, P["b2"], 2)
        f3 = block(f2, P["b3"], 4)
        f4 = block(f3, P["b4"], 1) + f2             # feat_4 = blk4(feat_3)+feat_2
        f5 = block(f4, P["b5"], 1) + f1             # feat_5 = blk5(feat_4)+feat_1
        out = conv(f5, P["p1"]["w"], P["p1"]["b"], 3, 1, relu=True)
        out = conv(out, P["p2"]["w"], P["p2"]["b"], 3, 1, relu=False)

        o_ref[0] = out                              # lane-dense (outplane, L)

    return kernel


# ---------------------------------------------------------------------------
# Parameter preprocessing: fold BN into weights, transpose to (Cout, K*K*Cin)
# ---------------------------------------------------------------------------
def _prep_params(params, cin_pad, eps=1e-5):
    def fold(bn):
        gamma, beta, mean, var = [jnp.asarray(v, jnp.float32) for v in bn]
        s = gamma / jnp.sqrt(var + eps)
        return s, beta - mean * s

    def wt(w, scale=None):
        # HWIO (K,K,Cin,Cout) -> (Cout, K*K*Cin) bf16; BN scale folded in f32.
        w = jnp.asarray(w, jnp.float32)
        if scale is not None:
            w = w * scale
        K, _, cin, cout = w.shape
        return w.reshape(K * K * cin, cout).T.astype(jnp.bfloat16)

    def col(b):
        return jnp.asarray(b, jnp.float32).reshape(-1, 1)

    outplane = params["pred2_b"].shape[0]
    dev = {}

    # Stem: pad Cin up to cin_pad with zero weight rows.
    w = params["conv1_w"]                                    # (5,5,inplane,16)
    K, _, cin, cout = w.shape
    wpad = jnp.zeros((K, K, cin_pad, cout), jnp.float32).at[:, :, :cin, :].set(w)
    s, b = fold(params["bn1"])
    dev["stem"] = {"w": wt(wpad, s), "b": col(b + params["conv1_b"] * s)}

    for i in range(1, 6):
        p = params[f"block_{i}"]
        s1, b1 = fold(p["bn1"])
        s2, b2 = fold(p["bn2"])
        d = {"w1": wt(p["conv1_w"], s1), "b1": col(b1),
             "w2": wt(p["conv2_w"], s2), "b2": col(b2)}
        if "shortcut_w" in p:
            d["wsc"] = p["shortcut_w"][0, 0].T.astype(jnp.bfloat16)  # (Cout,Cin)
        dev[f"b{i}"] = d

    # pred_1: pad Cout to a sublane multiple (padded channels are exactly 0),
    # pred_2: pad Cin to match (zero weights), output stays `outplane`.
    mid = max(8, _ceil8(outplane))
    sp, bp = fold(params["bn2"])
    w_p1 = params["pred1_w"] * sp
    bias_p1 = bp + params["pred1_b"] * sp
    w_p1 = jnp.pad(w_p1, ((0, 0), (0, 0), (0, 0), (0, mid - outplane)))
    bias_p1 = jnp.pad(bias_p1, (0, mid - outplane))
    dev["p1"] = {"w": wt(w_p1), "b": col(bias_p1)}
    w_p2 = jnp.pad(params["pred2_w"],
                   ((0, 0), (0, 0), (0, mid - outplane), (0, 0)))
    dev["p2"] = {"w": wt(w_p2), "b": col(params["pred2_b"])}
    return dev


def _pick_bsz(N):
    """Images per grid step: bigger matmul N dim, but keep the grid even so
    both v7x TensorCores get work."""
    for b in (8, 4, 2, 1):
        if N % b == 0 and (N // b) % 2 == 0:
            return b
    for b in (8, 4, 2, 1):
        if N % b == 0:
            return b
    return 1


def _probe_roll_sign():
    """Determine pltpu.roll's lane-rotation convention (run OUTSIDE jit).

    Returns -1 if pltpu.roll(x, a)[i] == x[(i - a) % n] (numpy convention),
    else +1.  The conv taps need tap[p] = x[p + s], which is a roll by
    roll_sign * s (mod L)."""
    n = 128
    x = jnp.broadcast_to(jnp.arange(n, dtype=jnp.int32)[None, :], (8, n))

    def k(x_ref, o_ref):
        o_ref[...] = pltpu.roll(x_ref[...], 1, axis=1)

    y = pl.pallas_call(k, out_shape=jax.ShapeDtypeStruct((8, n), jnp.int32))(x)
    numpy_conv = jnp.roll(jnp.arange(n, dtype=jnp.int32), 1)
    return -1 if bool(jnp.all(y[0] == numpy_conv)) else 1


# ---------------------------------------------------------------------------
# Forward pass (mirrors the PyTorch module)
# ---------------------------------------------------------------------------
def basic_network_fwd(x_nchw, params, *, roll_sign=-1, batch_per_step=None):
    N, inplane, H, W = x_nchw.shape
    HW = H * W
    assert HW % 128 == 0, "H*W must be a multiple of 128 for lane-dense tiling"
    outplane = int(params["pred2_b"].shape[0])
    cin_pad = max(8, _ceil8(inplane))

    bsz = batch_per_step or _pick_bsz(N)
    G = N // bsz
    L = bsz * HW

    # NCHW -> (G, cin_pad, bsz*H*W): reshape + tiny batch/channel transpose
    # (no-op when bsz == 1), cast to bf16.
    x = x_nchw.reshape(N, inplane, HW)
    x = jnp.pad(x, ((0, 0), (0, cin_pad - inplane), (0, 0)))
    x = x.reshape(G, bsz, cin_pad, HW).transpose(0, 2, 1, 3).reshape(G, cin_pad, L)
    x = x.astype(jnp.bfloat16)

    dev = _prep_params(params, cin_pad)
    flat, treedef = jax.tree_util.tree_flatten(dev)
    n_params = len(flat)

    kernel = _make_network_kernel(treedef, n_params, H, W, bsz, outplane,
                                  roll_sign)

    def _const_spec(p):
        nd = p.ndim
        # Grid-constant weights/biases: same block every step, Pallas only
        # DMAs them once.  (pl.Buffered(1) single-buffering intentionally not
        # used to keep lowering simple; VMEM cost is negligible here.)
        return pl.BlockSpec(p.shape, lambda g, _nd=nd: (0,) * _nd)

    out = pl.pallas_call(
        kernel,
        out_shape=jax.ShapeDtypeStruct((G, outplane, L), jnp.float32),
        grid=(G,),
        in_specs=([pl.BlockSpec((1, cin_pad, L), lambda g: (g, 0, 0))]
                  + [_const_spec(p) for p in flat]),
        out_specs=pl.BlockSpec((1, outplane, L), lambda g: (g, 0, 0)),
        compiler_params=pltpu.CompilerParams(
            dimension_semantics=("parallel",),
            vmem_limit_bytes=48 * 1024 * 1024),
    )(x, *flat)

    # (G, outplane, bsz*HW) -> NCHW (batch/channel-only transpose, tiny).
    out = out.reshape(G, outplane, bsz, H, W).transpose(0, 2, 1, 3, 4)
    return out.reshape(N, outplane, H, W)


# ---------------------------------------------------------------------------
# Pure-JAX reference (same folded-BN inference semantics, bf16 conv operands)
# ---------------------------------------------------------------------------
def _ref_forward(x_nchw, params, eps=1e-5):
    def fold(bn):
        gamma, beta, mean, var = [jnp.asarray(v, jnp.float32) for v in bn]
        s = gamma / jnp.sqrt(var + eps)
        return s, beta - mean * s

    def conv(x, w, dil, scale=None, bias=None, relu=False):
        w = jnp.asarray(w, jnp.float32)
        if scale is not None:
            w = w * scale
        K = w.shape[0]
        pad = dil * (K // 2)
        y = lax.conv_general_dilated(
            x.astype(jnp.bfloat16), w.astype(jnp.bfloat16),
            window_strides=(1, 1), padding=[(pad, pad), (pad, pad)],
            rhs_dilation=(dil, dil),
            dimension_numbers=("NCHW", "HWIO", "NCHW"),
            preferred_element_type=jnp.float32)
        if bias is not None:
            y = y + bias.reshape(1, -1, 1, 1)
        if relu:
            y = jnp.maximum(y, 0.0)
        return y

    def block(x, p, dil):
        s1, b1 = fold(p["bn1"])
        s2, b2 = fold(p["bn2"])
        h = conv(x, p["conv1_w"], dil, s1, b1, relu=True)
        o = conv(h, p["conv2_w"], dil, s2, b2, relu=False)
        if "shortcut_w" in p:
            o = o + conv(x, p["shortcut_w"], 1)
        else:
            o = o + x
        return jnp.maximum(o, 0.0)

    s0, b0 = fold(params["bn1"])
    feat = conv(x_nchw, params["conv1_w"], 1, s0,
                b0 + params["conv1_b"] * s0, relu=True)
    f1 = block(feat, params["block_1"], 1)
    f2 = block(f1, params["block_2"], 2)
    f3 = block(f2, params["block_3"], 4)
    f4 = block(f3, params["block_4"], 1) + f2
    f5 = block(f4, params["block_5"], 1) + f1
    sp, bp = fold(params["bn2"])
    out = conv(f5, params["pred1_w"], 1, sp,
               bp + params["pred1_b"] * sp, relu=True)
    out = conv(out, params["pred2_w"], 1, None, params["pred2_b"], relu=False)
    return out


# ---------------------------------------------------------------------------
# Deterministic parameter construction
# ---------------------------------------------------------------------------
def _conv_w(key, K, cin, cout):
    fan_in = K * K * cin
    return jax.random.normal(key, (K, K, cin, cout), jnp.float32) / jnp.sqrt(
        jnp.float32(fan_in))


def _bn_params(key, c):
    k1, k2, k3, k4 = jax.random.split(key, 4)
    gamma = 1.0 + 0.1 * jax.random.normal(k1, (c,), jnp.float32)
    beta = 0.1 * jax.random.normal(k2, (c,), jnp.float32)
    mean = 0.1 * jax.random.normal(k3, (c,), jnp.float32)
    var = 1.0 + 0.1 * jax.random.uniform(k4, (c,), jnp.float32)
    return gamma, beta, mean, var


def init_basic_block(key, cin, cout):
    ks = jax.random.split(key, 5)
    p = {"conv1_w": _conv_w(ks[0], 3, cin, cout),
         "bn1": _bn_params(ks[1], cout),
         "conv2_w": _conv_w(ks[2], 3, cout, cout),
         "bn2": _bn_params(ks[3], cout)}
    if cin != cout:
        p["shortcut_w"] = _conv_w(ks[4], 1, cin, cout)
    return p


def init_network(key, inplane, outplane):
    ks = jax.random.split(key, 13)
    return {
        "conv1_w": _conv_w(ks[0], 5, inplane, 16),
        "conv1_b": 0.01 * jax.random.normal(ks[1], (16,), jnp.float32),
        "bn1": _bn_params(ks[2], 16),
        "block_1": init_basic_block(ks[3], 16, 32),
        "block_2": init_basic_block(ks[4], 32, 32),
        "block_3": init_basic_block(ks[5], 32, 64),
        "block_4": init_basic_block(ks[6], 64, 32),
        "block_5": init_basic_block(ks[7], 32, 32),
        "pred1_w": _conv_w(ks[8], 3, 32, outplane),
        "pred1_b": 0.01 * jax.random.normal(ks[9], (outplane,), jnp.float32),
        "bn2": _bn_params(ks[10], outplane),
        "pred2_w": _conv_w(ks[11], 3, outplane, outplane),
        "pred2_b": 0.01 * jax.random.normal(ks[12], (outplane,), jnp.float32),
    }


# ---------------------------------------------------------------------------
if __name__ == "__main__":
    key = jax.random.PRNGKey(0)
    kx, kp = jax.random.split(key)

    inplane, outplane = 3, 4
    N, H, W = 2, 16, 16

    x = jax.random.normal(kx, (N, inplane, H, W), jnp.float32)  # NCHW like torch
    params = init_network(kp, inplane, outplane)

    roll_sign = _probe_roll_sign()     # resolve pltpu.roll shift convention
    fwd = jax.jit(functools.partial(basic_network_fwd, params=params,
                                    roll_sign=roll_sign))
    out = jax.block_until_ready(fwd(x))

    assert out.shape == (N, outplane, H, W), out.shape
    assert bool(jnp.all(jnp.isfinite(out)))

    # Numerical check against a pure-JAX reference with matching bf16 conv
    # operands (only accumulation-order differences remain -> loose tolerance
    # is a huge margin, but structural bugs would blow straight through it).
    ref = jax.block_until_ready(
        jax.jit(functools.partial(_ref_forward, params=params))(x))
    err = float(jnp.max(jnp.abs(out - ref)))
    scale = float(jnp.max(jnp.abs(ref)))
    assert err <= 5e-2 * max(1.0, scale), (err, scale)

    print("KERNEL_OK")
</pallas_src>

<mosaic_0001>
module attributes {stable_mosaic.version = 11 : i64} {
  func.func @k(%arg0: memref<8x128xi32, #tpu.memory_space<vmem>>, %arg1: memref<8x128xi32, #tpu.memory_space<vmem>>) attributes {dimension_semantics = [], scalar_prefetch = 0 : i64, scratch_operands = 0 : i64, tpu.core_type = #tpu.core_type<tc>} {
    %c0 = arith.constant 0 : index
    %c0_0 = arith.constant 0 : index
    %0 = vector.load %arg0[%c0, %c0_0] : memref<8x128xi32, #tpu.memory_space<vmem>>, vector<8x128xi32>
    %c1_i32 = arith.constant 1 : i32
    %1 = tpu.dynamic_rotate %0 by %c1_i32 dim 1 : vector<8x128xi32>, i32 -> vector<8x128xi32>
    %c0_1 = arith.constant 0 : index
    %c0_2 = arith.constant 0 : index
    %2 = vector.load %arg1[%c0_1, %c0_2] : memref<8x128xi32, #tpu.memory_space<vmem>>, vector<8x128xi32>
    tpu.vector_store %arg1[%c0_1, %c0_2], %1 {strides = array<i32>} : memref<8x128xi32, #tpu.memory_space<vmem>>, vector<8x128xi32>,
    return
  }
}

</mosaic_0001>

<llo_original>
// kernel: tpu_custom_call.1
$region0: #{tpu_custom_call.1}
  #allocation0 [shape = 'u32[]', space=smem, size = 0x4, offset = 0x4, fixed_abs, tag = 'smem constant byte address 0x4 - core index']
  #allocation1 [shape = 'u32[144,128]{1,0:T(1,128)}', space=vmem, size = 0x12000, scoped, tag = 'internal scratch']
  %s0 = inlined_call_operand.hbm [shape: s32[8,128], index: 0, kind: input, shape index: {}]
  %s1 = inlined_call_operand.hbm [shape: s32[8,128], index: 1, kind: output, shape index: {}]
  %s2 = sld [smem:[#allocation0]]
  $region18: #{tpu_custom_call.1} parent=0
    _
  %s4 = ssub.s32 1, %s2
  %s5 = scalar_select 0, %s4, %s2
  $region1: #{tpu_custom_call.1} parent=0
    #allocation2 [shape = 'u8[4096]{0}', space=vmem, size = 0x1000, scoped, tag = 'input window, operand 0, single buffered']
    #allocation3 [shape = 's32[1]{0}', space=sflag, size = 0x4, scoped, tag = 'scoped memory for tpu_custom_call.1']
    #allocation4 [shape = 's32[1]{0}', space=sflag, size = 0x4, scoped, tag = 'scoped memory for tpu_custom_call.1']
    #allocation5 [shape = 'u8[4096]{0}', space=vmem, size = 0x1000, scoped, tag = 'output window, operand 0, single buffered']
    %6 = vsyncpa [#allocation3], 0
    %7 = vsyncpa [#allocation4], 0
    // Predicated region
    $region2: #{tpu_custom_call.1} parent=1 // pred_check
      _
    $region3: #{tpu_custom_call.1} parent=1 // pred_check_branch
      %9 = sbr.rel (0) target = $region5
    $region4: #{tpu_custom_call.1} parent=1 // pred_region
      %s11 = ssub.s32 128, 128
      %12 = vsyncadd [#allocation3], %s11
      %s14 = sshll.u32 [#allocation2], 4
      %s15 = int_to_ptr.vmem [resolvable:$true] %s14
      %17 = dma.hbm_to_vmem [thread:$0]  %s0, 128, %s15, [#allocation3]
    $region5: #{tpu_custom_call.1} parent=1 // pred_fallthru
      _
    // Predicated region
    $region6: #{tpu_custom_call.1} parent=1 // pred_check
      _
    $region7: #{tpu_custom_call.1} parent=1 // pred_check_branch
      %19 = sbr.rel (0) target = $region9
    $region8: #{tpu_custom_call.1} parent=1 // pred_region
      %20 = dma.done [#allocation3], 128
    $region9: #{tpu_custom_call.1} parent=1 // pred_fallthru
      _
    %v21 = vld [vmem:[#allocation2] sm:$0xff]
    %22 = vrot.lane.b32.xlu0 %v21, 1
    %v23 = vpop.permute.xlu0 %22
    %24 = vst [vmem:[#allocation5] sm:$0xff] %v23
    // Predicated region
    $region10: #{tpu_custom_call.1} parent=1 // pred_check
      _
    $region11: #{tpu_custom_call.1} parent=1 // pred_check_branch
      %26 = sbr.rel (0) target = $region13
    $region12: #{tpu_custom_call.1} parent=1 // pred_region
      %s28 = ssub.s32 128, 128
      %29 = vsyncadd [#allocation4], %s28
      %s31 = sshll.u32 [#allocation5], 4
      %s32 = int_to_ptr.vmem [resolvable:$true] %s31
      %34 = dma.vmem_to_hbm [thread:$0]  %s32, 128, %s1, [#allocation4]
    $region13: #{tpu_custom_call.1} parent=1 // pred_fallthru
      _
    // Predicated region
    $region14: #{tpu_custom_call.1} parent=1 // pred_check
      _
    $region15: #{tpu_custom_call.1} parent=1 // pred_check_branch
      %36 = sbr.rel (0) target = $region17
    $region16: #{tpu_custom_call.1} parent=1 // pred_region
      %37 = dma.done [#allocation4], 128
    $region17: #{tpu_custom_call.1} parent=1 // pred_fallthru
      _
    %38 = vsyncpa [#allocation3], 1
    %39 = vsyncpa [#allocation4], 1

</llo_original>
